<compile_context>
chip_gen: v5e
topology: v5e:2x2
jax: 0.10.0
libtpu: 0.0.40
codegen_flags: <defaults>
</compile_context>

<pallas_src>
import functools

import jax
import jax.numpy as jnp
from jax.experimental import pallas as pl
from jax.experimental.pallas import tpu as pltpu


def _round_up(x, m):
    return ((x + m - 1) // m) * m


def _num_tensorcores():
    try:
        return max(1, int(getattr(jax.devices()[0], "num_cores", 1)))
    except Exception:
        return 1


def _vmem_budget_bytes():
    """(working-set budget, scoped vmem limit to request) for this chip."""
    try:
        phys = int(pltpu.get_tpu_info().vmem_capacity_bytes)
    except Exception:
        phys = 64 << 20                      # conservative (v7x-sized) fallback
    budget = max(16 << 20, phys // 2)        # v5e/v6e: 64 MiB, v7x: 32 MiB
    limit = min(phys - (8 << 20), budget + (16 << 20))
    return budget, limit


def _choose_col_tile(C, budget, w_itemsize):
    """Output-column tile tn (divides C).  tn == C unless W^T is too big."""
    if C % 128 != 0:
        return C                             # odd C: full-width blocks (== array dim)
    tn = C
    # Keep the double-buffered (C, tn) W^T slab to <= ~1/3 of the VMEM budget.
    while tn > 512 and tn % 256 == 0 and 2 * C * tn * w_itemsize > budget // 3:
        tn //= 2
    return tn


def _choose_row_tile(M, C, tn, x_itemsize, w_itemsize, budget):
    """Row tile: as large as the VMEM budget allows (amortize ~0.35us/step)."""
    m_all = _round_up(M, 8)
    resident = 2 * (C * tn * w_itemsize + tn * 4)            # W^T slab + bias, double-buffered
    per_row = 2 * (x_itemsize * C + x_itemsize * tn + 4 * 128)  # x + out + lane-padded mask, x2 bufs
    cap = max(8, (budget - resident) // per_row)
    tm_max = 2048 if budget >= (48 << 20) else 1024
    if m_all <= min(cap, tm_max):
        tm = m_all                                           # one row tile covers everything
    else:
        tm = min(cap, tm_max)
        tm = (tm // 256) * 256 if tm >= 256 else max(8, (tm // 8) * 8)
    # Only when there are multiple TensorCores (v7x) is it worth shrinking the
    # tile to keep the "parallel" row axis shardable; on 1-TC chips the grid
    # is a serial loop and smaller tiles only add step overhead.
    ncores = _num_tensorcores()
    if ncores > 1:
        while tm > 256 and (M + tm - 1) // tm < 2 * ncores:
            tm //= 2
    return max(8, tm)


def _make_smlp_kernel(n_col, tn, compute_dtype):
    def kernel(x_ref, m_ref, w_ref, b_ref, o_ref):
        # x_ref: (tm, C)   m_ref: (tm, 1)   w_ref: (C, tn) [= W^T cols]
        # b_ref: (1, tn)   o_ref: (tm, tn)
        x = x_ref[...]
        a = x.astype(compute_dtype)
        w = w_ref[...].astype(compute_dtype)
        y = jnp.dot(a, w, preferred_element_type=jnp.float32)   # MXU, f32 accumulate
        y = jnp.maximum(y + b_ref[...], 0.0)                    # Linear + ReLU
        if n_col == 1:
            x_cols = x
        else:
            start = pl.multiple_of(pl.program_id(1) * tn, 128)
            x_cols = x_ref[:, pl.ds(start, tn)]                 # aligned lane slice
        # m is exactly 0/1 -> single vselect per vreg.
        o_ref[...] = jnp.where(m_ref[...] > 0.0, y, x_cols).astype(o_ref.dtype)
    return kernel


def _blend_linear_relu(x2d, m2d, w_t, b_row, *, tm, tn, compute_dtype, vmem_limit):
    """x2d: (M, C), m2d: (M, 1), w_t: (C, C) = W^T (compute_dtype), b_row: (1, C) f32."""
    M, C = x2d.shape
    assert C % tn == 0 and (tn == C or tn % 128 == 0)
    assert tm % 8 == 0
    n_row = pl.cdiv(M, tm)
    n_col = C // tn
    kernel = _make_smlp_kernel(n_col, tn, compute_dtype)
    return pl.pallas_call(
        kernel,
        out_shape=jax.ShapeDtypeStruct((M, C), x2d.dtype),
        grid_spec=pltpu.PrefetchScalarGridSpec(
            num_scalar_prefetch=0,
            grid=(n_row, n_col),
            in_specs=[
                pl.BlockSpec((tm, C), lambda i, j: (i, 0)),   # activations (full channel width)
                pl.BlockSpec((tm, 1), lambda i, j: (i, 0)),   # fg-token mask
                pl.BlockSpec((C, tn), lambda i, j: (0, j)),   # W^T column slab (resident if n_col==1)
                pl.BlockSpec((1, tn), lambda i, j: (0, j)),   # bias row
            ],
            out_specs=pl.BlockSpec((tm, tn), lambda i, j: (i, j)),
        ),
        compiler_params=pltpu.CompilerParams(
            dimension_semantics=("parallel", "arbitrary"),
            vmem_limit_bytes=int(vmem_limit),
        ),
    )(x2d, m2d, w_t, b_row)


def smlp_forward(x, mask, fg_gt, weight, bias, *,
                 matmul_dtype=jnp.bfloat16, tm=None, tn=None):
    """
    Args:
      x:      (N, B, C) float32 tokens.
      mask:   (B, N) or None; 0 = valid, 1 = padding.
      fg_gt:  (N, B) foreground ground-truth (nonzero == fg).
      weight: (C, C) nn.Linear weight (out_features, in_features).
      bias:   (C,)   nn.Linear bias.
      matmul_dtype: dtype of the MXU operands (bf16 default; f32 for bit-exact
                    parity with the f32 reference).  Accumulation is always f32.
      tm, tn: optional tile overrides (testing / tuning).
    Returns dict with 'x' (N, B, C) and 'gt_fg_token_mask' (N, B).
    """
    N, B, C = x.shape
    if mask is None:
        valid = jnp.ones((N, B), jnp.float32)
    else:
        valid = (~mask.astype(bool)).astype(jnp.float32).T       # (N, B)
    gt_fg_token_mask = (fg_gt != 0).astype(jnp.float32) * valid   # (N, B)

    M = N * B
    # Reshapes only -- no pad / slice copies of the activation tensor.
    x2d = x.reshape(M, C)
    m2d = gt_fg_token_mask.reshape(M, 1)
    w_t = weight.T.astype(matmul_dtype)                # (C_in, C_out), small copy
    b_row = bias.astype(jnp.float32).reshape(1, C)

    budget, vmem_limit = _vmem_budget_bytes()
    w_itemsize = jnp.dtype(matmul_dtype).itemsize
    x_itemsize = jnp.dtype(x2d.dtype).itemsize
    if tn is None:
        tn = _choose_col_tile(C, budget, w_itemsize)
    if tm is None:
        tm = _choose_row_tile(M, C, tn, x_itemsize, w_itemsize, budget)

    out2d = _blend_linear_relu(x2d, m2d, w_t, b_row, tm=tm, tn=tn,
                               compute_dtype=matmul_dtype, vmem_limit=vmem_limit)
    return {"x": out2d.reshape(N, B, C), "gt_fg_token_mask": gt_fg_token_mask}


def _reference(x, mask, fg_gt, weight, bias, matmul_dtype=jnp.float32):
    N, B, C = x.shape
    if mask is None:
        valid = jnp.ones((N, B), jnp.float32)
    else:
        valid = (~mask.astype(bool)).astype(jnp.float32).T
    m = (fg_gt != 0).astype(jnp.float32) * valid
    y = jnp.einsum("nbc,co->nbo", x.astype(matmul_dtype),
                   weight.T.astype(matmul_dtype),
                   preferred_element_type=jnp.float32)
    y = jnp.maximum(y + bias.astype(jnp.float32), 0.0)
    x_new = x * (1.0 - m)[..., None] + m[..., None] * y
    return x_new, m


if __name__ == "__main__":
    key = jax.random.PRNGKey(0)

    def run_case(case_id, N, B, C, *, with_mask=True, tm=None, tn=None,
                 matmul_dtype=jnp.float32, atol=1e-5, rtol=1e-5):
        ks = jax.random.split(jax.random.fold_in(key, case_id), 5)
        x = jax.random.normal(ks[0], (N, B, C), dtype=jnp.float32)
        mask = ((jax.random.uniform(ks[1], (B, N)) < 0.25).astype(jnp.int32)
                if with_mask else None)
        fg_gt = (jax.random.uniform(ks[2], (N, B)) < 0.5).astype(jnp.int32)
        weight = jax.random.normal(ks[3], (C, C), dtype=jnp.float32) * 0.05
        bias = jax.random.normal(ks[4], (C,), dtype=jnp.float32) * 0.05

        out = smlp_forward(x, mask, fg_gt, weight, bias,
                           matmul_dtype=matmul_dtype, tm=tm, tn=tn)
        jax.block_until_ready(out["x"])

        ref_x, ref_m = _reference(x, mask, fg_gt, weight, bias,
                                  matmul_dtype=matmul_dtype)
        assert jnp.allclose(out["x"], ref_x, atol=atol, rtol=rtol), f"case {case_id}"
        assert jnp.array_equal(out["gt_fg_token_mask"], ref_m), f"case {case_id}"

    # 1) ragged M (150 rows), C not a multiple of 128, f32 matmul, auto tiles.
    run_case(1, 50, 3, 32, matmul_dtype=jnp.float32)
    # 2) same problem, multiple ragged row blocks, default bf16 matmul path.
    run_case(2, 50, 3, 32, tm=64, matmul_dtype=jnp.bfloat16, atol=1e-3, rtol=1e-3)
    # 3) lane-dense C (128), mask=None branch, ragged single block.
    run_case(3, 30, 2, 128, with_mask=False, matmul_dtype=jnp.float32)
    # 4) weight-column-tiled path (forced tn < C), exercises program_id(1) slice.
    run_case(4, 24, 2, 256, tn=128, matmul_dtype=jnp.float32)

    print("KERNEL_OK")
</pallas_src>

<mosaic_0001>
module attributes {stable_mosaic.version = 11 : i64} {
  func.func @kernel(%arg0: i32, %arg1: i32, %arg2: memref<152x32xf32, #tpu.memory_space<vmem>>, %arg3: memref<152x1xf32, #tpu.memory_space<vmem>>, %arg4: memref<32x32xf32, #tpu.memory_space<vmem>>, %arg5: memref<1x32xf32, #tpu.memory_space<vmem>>, %arg6: memref<152x32xf32, #tpu.memory_space<vmem>>) attributes {dimension_semantics = [#tpu.dimension_semantics<parallel>, #tpu.dimension_semantics<arbitrary>], iteration_bounds = array<i64: 1, 1>, scalar_prefetch = 0 : i64, scratch_operands = 0 : i64, tpu.core_type = #tpu.core_type<tc>, window_params = [{transform_indices = @transform_0, window_bounds = array<i64: 152, 32>}, {transform_indices = @transform_1, window_bounds = array<i64: 152, 1>}, {transform_indices = @transform_2, window_bounds = array<i64: 32, 32>}, {transform_indices = @transform_3, window_bounds = array<i64: 1, 32>}, {transform_indices = @transform_4, window_bounds = array<i64: 152, 32>}]} {
    %c0 = arith.constant 0 : index
    %c0_0 = arith.constant 0 : index
    %0 = vector.load %arg2[%c0, %c0_0] : memref<152x32xf32, #tpu.memory_space<vmem>>, vector<152x32xf32>
    %c0_1 = arith.constant 0 : index
    %c0_2 = arith.constant 0 : index
    %1 = vector.load %arg4[%c0_1, %c0_2] : memref<32x32xf32, #tpu.memory_space<vmem>>, vector<32x32xf32>
    %cst = arith.constant dense<0.000000e+00> : vector<152x32xf32>
    %2 = tpu.matmul %0, %1, %cst {dimension_numbers = #tpu.dot_dimension_numbers<[1], [0], [0], [1], [0, 0, 1, 1], [], []>} : vector<152x32xf32>, vector<32x32xf32>, vector<152x32xf32> -> vector<152x32xf32>
    %c0_3 = arith.constant 0 : index
    %c0_4 = arith.constant 0 : index
    %3 = vector.load %arg5[%c0_3, %c0_4] : memref<1x32xf32, #tpu.memory_space<vmem>>, vector<1x32xf32>
    %4 = vector.broadcast %3 : vector<1x32xf32> to vector<152x32xf32>
    %5 = arith.addf %2, %4 : vector<152x32xf32>
    %cst_5 = arith.constant 0.000000e+00 : f32
    %6 = vector.broadcast %cst_5 : f32 to vector<152x32xf32>
    %7 = arith.maximumf %5, %6 : vector<152x32xf32>
    %c0_6 = arith.constant 0 : index
    %c0_7 = arith.constant 0 : index
    %8 = vector.load %arg3[%c0_6, %c0_7] : memref<152x1xf32, #tpu.memory_space<vmem>>, vector<152x1xf32>
    %cst_8 = arith.constant 0.000000e+00 : f32
    %9 = vector.broadcast %cst_8 : f32 to vector<152x1xf32>
    %10 = arith.cmpf ogt, %8, %9 : vector<152x1xf32>
    %11 = vector.shape_cast %10 : vector<152x1xi1> to vector<152x1xi1>
    %12 = vector.broadcast %11 : vector<152x1xi1> to vector<152x32xi1>
    %13 = arith.select %12, %7, %0 : vector<152x32xi1>, vector<152x32xf32>
    %c0_9 = arith.constant 0 : index
    %c0_10 = arith.constant 0 : index
    %14 = vector.load %arg6[%c0_9, %c0_10] : memref<152x32xf32, #tpu.memory_space<vmem>>, vector<152x32xf32>
    tpu.vector_store %arg6[%c0_9, %c0_10], %13 {strides = array<i32>} : memref<152x32xf32, #tpu.memory_space<vmem>>, vector<152x32xf32>,
    return
  }
  func.func @transform_0(%arg0: i32, %arg1: i32) -> (i32, i32) {
    %c0_i32 = arith.constant 0 : i32
    %c0_i32_0 = arith.constant 0 : i32
    return %arg0, %c0_i32 : i32, i32
  }
  func.func @transform_1(%arg0: i32, %arg1: i32) -> (i32, i32) {
    %c0_i32 = arith.constant 0 : i32
    %c0_i32_0 = arith.constant 0 : i32
    return %arg0, %c0_i32 : i32, i32
  }
  func.func @transform_2(%arg0: i32, %arg1: i32) -> (i32, i32) {
    %c0_i32 = arith.constant 0 : i32
    %c0_i32_0 = arith.constant 0 : i32
    return %c0_i32, %arg1 : i32, i32
  }
  func.func @transform_3(%arg0: i32, %arg1: i32) -> (i32, i32) {
    %c0_i32 = arith.constant 0 : i32
    %c0_i32_0 = arith.constant 0 : i32
    return %c0_i32, %arg1 : i32, i32
  }
  func.func @transform_4(%arg0: i32, %arg1: i32) -> (i32, i32) {
    %c0_i32 = arith.constant 0 : i32
    return %arg0, %arg1 : i32, i32
  }
}

</mosaic_0001>

<llo_original>
// kernel: tpu_custom_call.1
$region0: #{tpu_custom_call.1}
  #allocation0 [shape = 'u32[]', space=smem, size = 0x4, offset = 0x4, fixed_abs, tag = 'smem constant byte address 0x4 - core index']
  #allocation1 [shape = 'u32[72,128]{1,0:T(1,128)}', space=vmem, size = 0x9000, scoped, tag = 'internal scratch']
  %s0 = inlined_call_operand.vmem [shape: f32[150,32], index: 0, kind: input, shape index: {}]
  %s1 = inlined_call_operand.vmem [shape: f32[150,1], index: 1, kind: input, shape index: {}]
  %s2 = inlined_call_operand.vmem [shape: f32[32,32], index: 2, kind: input, shape index: {}]
  %s3 = inlined_call_operand.vmem [shape: f32[1,32], index: 3, kind: input, shape index: {}]
  %s4 = inlined_call_operand.vmem [shape: f32[150,32], index: 4, kind: output, shape index: {}]
  %s5 = sld [smem:[#allocation0]]
  $region26: #{tpu_custom_call.1} parent=0
    _
  %s7 = ssub.s32 1, %s5
  %s8 = scalar_select 0, %s7, %s5
  // Predicated region
  $region2: #{tpu_custom_call.1} parent=0 // pred_check
    _
  $region3: #{tpu_custom_call.1} parent=0 // pred_check_branch
    %10 = sbr.rel (0) target = $region5
  $region4: #{tpu_custom_call.1} parent=0 // pred_region
    _
  $region5: #{tpu_custom_call.1} parent=0 // pred_fallthru
    _
  // Predicated region
  $region6: #{tpu_custom_call.1} parent=0 // pred_check
    _
  $region7: #{tpu_custom_call.1} parent=0 // pred_check_branch
    %12 = sbr.rel (0) target = $region9
  $region8: #{tpu_custom_call.1} parent=0 // pred_region
    _
  $region9: #{tpu_custom_call.1} parent=0 // pred_fallthru
    _
  // Predicated region
  $region10: #{tpu_custom_call.1} parent=0 // pred_check
    _
  $region11: #{tpu_custom_call.1} parent=0 // pred_check_branch
    %14 = sbr.rel (0) target = $region13
  $region12: #{tpu_custom_call.1} parent=0 // pred_region
    _
  $region13: #{tpu_custom_call.1} parent=0 // pred_fallthru
    _
  // Predicated region
  $region14: #{tpu_custom_call.1} parent=0 // pred_check
    _
  $region15: #{tpu_custom_call.1} parent=0 // pred_check_branch
    %16 = sbr.rel (0) target = $region17
  $region16: #{tpu_custom_call.1} parent=0 // pred_region
    _
  $region17: #{tpu_custom_call.1} parent=0 // pred_fallthru
    _
  %v17 = vld [vmem:[%s0] sm:$0xff]
  %v18 = vld [vmem:[%s0 + $0x8] sm:$0xff]
  %v19 = vld [vmem:[%s0 + $0x10] sm:$0xff]
  %v20 = vld [vmem:[%s0 + $0x18] sm:$0xff]
  %v21 = vld [vmem:[%s0 + $0x20] sm:$0xff]
  %v22 = vld [vmem:[%s0 + $0x28] sm:$0xff]
  %v23 = vld [vmem:[%s0 + $0x30] sm:$0xff]
  %v24 = vld [vmem:[%s0 + $0x38] sm:$0xff]
  %v25 = vld [vmem:[%s0 + $0x40] sm:$0xff]
  %v26 = vld [vmem:[%s0 + $0x48] sm:$0xff]
  %v27 = vld [vmem:[%s0 + $0x50] sm:$0xff]
  %v28 = vld [vmem:[%s0 + $0x58] sm:$0xff]
  %v29 = vld [vmem:[%s0 + $0x60] sm:$0xff]
  %v30 = vld [vmem:[%s0 + $0x68] sm:$0xff]
  %v31 = vld [vmem:[%s0 + $0x70] sm:$0xff]
  %v32 = vld [vmem:[%s0 + $0x78] sm:$0xff]
  %v33 = vld [vmem:[%s0 + $0x80] sm:$0xff]
  %v34 = vld [vmem:[%s0 + $0x88] sm:$0xff]
  %v35 = vld [vmem:[%s0 + $0x90] sm:$0xff]
  %v36 = vld [vmem:[%s2] sm:$0xff]
  %v37 = vld [vmem:[%s2 + $0x8] sm:$0xff]
  %v38 = vld [vmem:[%s2 + $0x10] sm:$0xff]
  %v39 = vld [vmem:[%s2 + $0x18] sm:$0xff]
  %v40 = vld [vmem:[%s3] sm:$0x1]
  %v42 = vperm.slane %v40, 0
  %vm44 = vcmask 261120
  %v46 = vsel %vm44, %v17, 0
  %v49 = vsel %vm44, %v18, 0
  %v52 = vsel %vm44, %v19, 0
  %v55 = vsel %vm44, %v20, 0
  %v58 = vsel %vm44, %v21, 0
  %v61 = vsel %vm44, %v22, 0
  %v64 = vsel %vm44, %v23, 0
  %v67 = vsel %vm44, %v24, 0
  %v70 = vsel %vm44, %v25, 0
  %v73 = vsel %vm44, %v26, 0
  %v76 = vsel %vm44, %v27, 0
  %v79 = vsel %vm44, %v28, 0
  %v82 = vsel %vm44, %v29, 0
  %v85 = vsel %vm44, %v30, 0
  %v88 = vsel %vm44, %v31, 0
  %v91 = vsel %vm44, %v32, 0
  %v94 = vsel %vm44, %v33, 0
  %v97 = vsel %vm44, %v34, 0
  %v100 = vsel %vm44, %v35, 0
  %102 = vmatpush.msra.mxu0 0.0
  %103 = vmatpush.msra.mxu0 0.0
  %104 = vmatpush.msra.mxu0 0.0
  %105 = vmatpush.msra.mxu0 0.0
  %106 = vmatpush.msra.mxu0 0.0
  %107 = vmatpush.msra.mxu0 0.0
  %108 = vmatpush.msra.mxu0 0.0
  %109 = vmatpush.msra.mxu0 0.0
  %110 = vmatpush.msra.mxu0 0.0
  %111 = vmatpush.msra.mxu0 0.0
  %112 = vmatpush.msra.mxu0 0.0
  %113 = vmatpush.msra.mxu0 0.0
  %114 = vmatpush.msra.mxu0 %v39
  %115 = vmatpush.msra.mxu0 %v38
  %116 = vmatpush.msra.mxu0 %v37
  %117 = vmatpush.msra.mxu0 %v36
  %118 = vmatmul.f32.gmra.mxu0 %v46
  %v119 = vpop.f32.mrf.mxu0
  %v120 = vadd.f32 %v42, %v119
  %121 = vmatmul.f32.gmra.mxu0 %v49
  %v122 = vpop.f32.mrf.mxu0
  %v123 = vadd.f32 %v42, %v122
  %124 = vmatmul.f32.gmra.mxu0 %v52
  %v125 = vpop.f32.mrf.mxu0
  %v126 = vadd.f32 %v42, %v125
  %127 = vmatmul.f32.gmra.mxu0 %v55
  %v128 = vpop.f32.mrf.mxu0
  %v129 = vadd.f32 %v42, %v128
  %130 = vmatmul.f32.gmra.mxu0 %v58
  %v131 = vpop.f32.mrf.mxu0
  %v132 = vadd.f32 %v42, %v131
  %133 = vmatmul.f32.gmra.mxu0 %v61
  %v134 = vpop.f32.mrf.mxu0
  %v135 = vadd.f32 %v42, %v134
  %136 = vmatmul.f32.gmra.mxu0 %v64
  %v137 = vpop.f32.mrf.mxu0
  %v138 = vadd.f32 %v42, %v137
  %139 = vmatmul.f32.gmra.mxu0 %v67
  %v140 = vpop.f32.mrf.mxu0
  %v141 = vadd.f32 %v42, %v140
  %142 = vmatmul.f32.gmra.mxu0 %v70
  %v143 = vpop.f32.mrf.mxu0
  %v144 = vadd.f32 %v42, %v143
  %145 = vmatmul.f32.gmra.mxu0 %v73
  %v146 = vpop.f32.mrf.mxu0
  %v147 = vadd.f32 %v42, %v146
  %148 = vmatmul.f32.gmra.mxu0 %v76
  %v149 = vpop.f32.mrf.mxu0
  %v150 = vadd.f32 %v42, %v149
  %151 = vmatmul.f32.gmra.mxu0 %v79
  %v152 = vpop.f32.mrf.mxu0
  %v153 = vadd.f32 %v42, %v152
  %154 = vmatmul.f32.gmra.mxu0 %v82
  %v155 = vpop.f32.mrf.mxu0
  %v156 = vadd.f32 %v42, %v155
  %157 = vmatmul.f32.gmra.mxu0 %v85
  %v158 = vpop.f32.mrf.mxu0
  %v159 = vadd.f32 %v42, %v158
  %160 = vmatmul.f32.gmra.mxu0 %v88
  %v161 = vpop.f32.mrf.mxu0
  %v162 = vadd.f32 %v42, %v161
  %163 = vmatmul.f32.gmra.mxu0 %v91
  %v164 = vpop.f32.mrf.mxu0
  %v165 = vadd.f32 %v42, %v164
  %166 = vmatmul.f32.gmra.mxu0 %v94
  %v167 = vpop.f32.mrf.mxu0
  %v168 = vadd.f32 %v42, %v167
  %169 = vmatmul.f32.gmra.mxu0 %v97
  %v170 = vpop.f32.mrf.mxu0
  %v171 = vadd.f32 %v42, %v170
  %172 = vmatmul.f32.gmra.mxu0 %v100
  %v173 = vpop.f32.mrf.mxu0
  %v174 = vadd.f32 %v42, %v173
  %175 = vdwg.mxu0
  %v176 = vmax.f32 %v120, 0.0
  %v177 = vmax.f32 %v123, 0.0
  %v178 = vmax.f32 %v126, 0.0
  %v179 = vmax.f32 %v129, 0.0
  %v180 = vmax.f32 %v132, 0.0
  %v181 = vmax.f32 %v135, 0.0
  %v182 = vmax.f32 %v138, 0.0
  %v183 = vmax.f32 %v141, 0.0
  %v184 = vmax.f32 %v144, 0.0
  %v185 = vmax.f32 %v147, 0.0
  %v186 = vmax.f32 %v150, 0.0
  %v187 = vmax.f32 %v153, 0.0
  %v188 = vmax.f32 %v156, 0.0
  %v189 = vmax.f32 %v159, 0.0
  %v190 = vmax.f32 %v162, 0.0
  %v191 = vmax.f32 %v165, 0.0
  %v192 = vmax.f32 %v168, 0.0
  %v193 = vmax.f32 %v171, 0.0
  %v194 = vmax.f32 %v174, 0.0
  %v195 = vld [vmem:[%s1] sm:$0xff]
  %v196 = vld [vmem:[%s1 + $0x8] sm:$0xff]
  %v197 = vld [vmem:[%s1 + $0x10] sm:$0xff]
  %v198 = vld [vmem:[%s1 + $0x18] sm:$0xff]
  %v199 = vld [vmem:[%s1 + $0x20] sm:$0xff]
  %v200 = vld [vmem:[%s1 + $0x28] sm:$0xff]
  %v201 = vld [vmem:[%s1 + $0x30] sm:$0xff]
  %v202 = vld [vmem:[%s1 + $0x38] sm:$0xff]
  %v203 = vld [vmem:[%s1 + $0x40] sm:$0xff]
  %v204 = vld [vmem:[%s1 + $0x48] sm:$0xff]
  %v205 = vld [vmem:[%s1 + $0x50] sm:$0xff]
  %v206 = vld [vmem:[%s1 + $0x58] sm:$0xff]
  %v207 = vld [vmem:[%s1 + $0x60] sm:$0xff]
  %v208 = vld [vmem:[%s1 + $0x68] sm:$0xff]
  %v209 = vld [vmem:[%s1 + $0x70] sm:$0xff]
  %v210 = vld [vmem:[%s1 + $0x78] sm:$0xff]
  %v211 = vld [vmem:[%s1 + $0x80] sm:$0xff]
  %v212 = vld [vmem:[%s1 + $0x88] sm:$0xff]
  %v213 = vld [vmem:[%s1 + $0x90] sm:$0xff]
  %vm214 = vcmp.gt.f32.partialorder %v195, 0.0
  %vm215 = vcmp.gt.f32.partialorder %v196, 0.0
  %vm216 = vcmp.gt.f32.partialorder %v197, 0.0
  %vm217 = vcmp.gt.f32.partialorder %v198, 0.0
  %vm218 = vcmp.gt.f32.partialorder %v199, 0.0
  %vm219 = vcmp.gt.f32.partialorder %v200, 0.0
  %vm220 = vcmp.gt.f32.partialorder %v201, 0.0
  %vm221 = vcmp.gt.f32.partialorder %v202, 0.0
  %vm222 = vcmp.gt.f32.partialorder %v203, 0.0
  %vm223 = vcmp.gt.f32.partialorder %v204, 0.0
  %vm224 = vcmp.gt.f32.partialorder %v205, 0.0
  %vm225 = vcmp.gt.f32.partialorder %v206, 0.0
  %vm226 = vcmp.gt.f32.partialorder %v207, 0.0
  %vm227 = vcmp.gt.f32.partialorder %v208, 0.0
  %vm228 = vcmp.gt.f32.partialorder %v209, 0.0
  %vm229 = vcmp.gt.f32.partialorder %v210, 0.0
  %vm230 = vcmp.gt.f32.partialorder %v211, 0.0
  %vm231 = vcmp.gt.f32.partialorder %v212, 0.0
  %vm232 = vcmp.gt.f32.partialorder %v213, 0.0
  %v233 = vsel %vm214, 1, 0
  %v234 = vsel %vm215, 1, 0
  %v235 = vsel %vm216, 1, 0
  %v236 = vsel %vm217, 1, 0
  %v237 = vsel %vm218, 1, 0
  %v238 = vsel %vm219, 1, 0
  %v239 = vsel %vm220, 1, 0
  %v240 = vsel %vm221, 1, 0
  %v241 = vsel %vm222, 1, 0
  %v242 = vsel %vm223, 1, 0
  %v243 = vsel %vm224, 1, 0
  %v244 = vsel %vm225, 1, 0
  %v245 = vsel %vm226, 1, 0
  %v246 = vsel %vm227, 1, 0
  %v247 = vsel %vm228, 1, 0
  %v248 = vsel %vm229, 1, 0
  %v249 = vsel %vm230, 1, 0
  %v250 = vsel %vm231, 1, 0
  %v251 = vsel %vm232, 1, 0
  %252 = vset.pattern.permute.xlu0 0
  %253 = vperm.xlu0 %252, %v233
  %v254 = vpop.permute.xlu0 %253
  %255 = vset.pattern.permute.xlu0 0
  %256 = vperm.xlu0 %255, %v234
  %v257 = vpop.permute.xlu0 %256
  %258 = vset.pattern.permute.xlu0 0
  %259 = vperm.xlu0 %258, %v235
  %v260 = vpop.permute.xlu0 %259
  %261 = vset.pattern.permute.xlu0 0
  %262 = vperm.xlu0 %261, %v236
  %v263 = vpop.permute.xlu0 %262
  %264 = vset.pattern.permute.xlu0 0
  %265 = vperm.xlu0 %264, %v237
  %v266 = vpop.permute.xlu0 %265
  %267 = vset.pattern.permute.xlu0 0
  %268 = vperm.xlu0 %267, %v238
  %v269 = vpop.permute.xlu0 %268
  %270 = vset.pattern.permute.xlu0 0
  %271 = vperm.xlu0 %270, %v239
  %v272 = vpop.permute.xlu0 %271
  %273 = vset.pattern.permute.xlu0 0
  %274 = vperm.xlu0 %273, %v240
  %v275 = vpop.permute.xlu0 %274
  %276 = vset.pattern.permute.xlu0 0
  %277 = vperm.xlu0 %276, %v241
  %v278 = vpop.permute.xlu0 %277
  %279 = vset.pattern.permute.xlu0 0
  %280 = vperm.xlu0 %279, %v242
  %v281 = vpop.permute.xlu0 %280
  %282 = vset.pattern.permute.xlu0 0
  %283 = vperm.xlu0 %282, %v243
  %v284 = vpop.permute.xlu0 %283
  %285 = vset.pattern.permute.xlu0 0
  %286 = vperm.xlu0 %285, %v244
  %v287 = vpop.permute.xlu0 %286
  %288 = vset.pattern.permute.xlu0 0
  %289 = vperm.xlu0 %288, %v245
  %v290 = vpop.permute.xlu0 %289
  %291 = vset.pattern.permute.xlu0 0
  %292 = vperm.xlu0 %291, %v246
  %v293 = vpop.permute.xlu0 %292
  %294 = vset.pattern.permute.xlu0 0
  %295 = vperm.xlu0 %294, %v247
  %v296 = vpop.permute.xlu0 %295
  %297 = vset.pattern.permute.xlu0 0
  %298 = vperm.xlu0 %297, %v248
  %v299 = vpop.permute.xlu0 %298
  %300 = vset.pattern.permute.xlu0 0
  %301 = vperm.xlu0 %300, %v249
  %v302 = vpop.permute.xlu0 %301
  %303 = vset.pattern.permute.xlu0 0
  %304 = vperm.xlu0 %303, %v250
  %v305 = vpop.permute.xlu0 %304
  %306 = vset.pattern.permute.xlu0 0
  %307 = vperm.xlu0 %306, %v251
  %v308 = vpop.permute.xlu0 %307
  %vm309 = vcmp.eq.s32.totalorder %v254, 1
  %vm310 = vcmp.eq.s32.totalorder %v257, 1
  %vm311 = vcmp.eq.s32.totalorder %v260, 1
  %vm312 = vcmp.eq.s32.totalorder %v263, 1
  %vm313 = vcmp.eq.s32.totalorder %v266, 1
  %vm314 = vcmp.eq.s32.totalorder %v269, 1
  %vm315 = vcmp.eq.s32.totalorder %v272, 1
  %vm316 = vcmp.eq.s32.totalorder %v275, 1
  %vm317 = vcmp.eq.s32.totalorder %v278, 1
  %vm318 = vcmp.eq.s32.totalorder %v281, 1
  %vm319 = vcmp.eq.s32.totalorder %v284, 1
  %vm320 = vcmp.eq.s32.totalorder %v287, 1
  %vm321 = vcmp.eq.s32.totalorder %v290, 1
  %vm322 = vcmp.eq.s32.totalorder %v293, 1
  %vm323 = vcmp.eq.s32.totalorder %v296, 1
  %vm324 = vcmp.eq.s32.totalorder %v299, 1
  %vm325 = vcmp.eq.s32.totalorder %v302, 1
  %vm326 = vcmp.eq.s32.totalorder %v305, 1
  %vm327 = vcmp.eq.s32.totalorder %v308, 1
  %v328 = vsel %vm309, %v176, %v17
  %v329 = vsel %vm310, %v177, %v18
  %v330 = vsel %vm311, %v178, %v19
  %v331 = vsel %vm312, %v179, %v20
  %v332 = vsel %vm313, %v180, %v21
  %v333 = vsel %vm314, %v181, %v22
  %v334 = vsel %vm315, %v182, %v23
  %v335 = vsel %vm316, %v183, %v24
  %v336 = vsel %vm317, %v184, %v25
  %v337 = vsel %vm318, %v185, %v26
  %v338 = vsel %vm319, %v186, %v27
  %v339 = vsel %vm320, %v187, %v28
  %v340 = vsel %vm321, %v188, %v29
  %v341 = vsel %vm322, %v189, %v30
  %v342 = vsel %vm323, %v190, %v31
  %v343 = vsel %vm324, %v191, %v32
  %v344 = vsel %vm325, %v192, %v33
  %v345 = vsel %vm326, %v193, %v34
  %v346 = vsel %vm327, %v194, %v35
  %347 = vst.msk [vmem:[%s4] sm:$0xff] %vm44, %v328
  %348 = vst.msk [vmem:[%s4 + $0x8] sm:$0xff] %vm44, %v329
  %349 = vst.msk [vmem:[%s4 + $0x10] sm:$0xff] %vm44, %v330
  %350 = vst.msk [vmem:[%s4 + $0x18] sm:$0xff] %vm44, %v331
  %351 = vst.msk [vmem:[%s4 + $0x20] sm:$0xff] %vm44, %v332
  %352 = vst.msk [vmem:[%s4 + $0x28] sm:$0xff] %vm44, %v333
  %353 = vst.msk [vmem:[%s4 + $0x30] sm:$0xff] %vm44, %v334
  %354 = vst.msk [vmem:[%s4 + $0x38] sm:$0xff] %vm44, %v335
  %355 = vst.msk [vmem:[%s4 + $0x40] sm:$0xff] %vm44, %v336
  %356 = vst.msk [vmem:[%s4 + $0x48] sm:$0xff] %vm44, %v337
  %357 = vst.msk [vmem:[%s4 + $0x50] sm:$0xff] %vm44, %v338
  %358 = vst.msk [vmem:[%s4 + $0x58] sm:$0xff] %vm44, %v339
  %359 = vst.msk [vmem:[%s4 + $0x60] sm:$0xff] %vm44, %v340
  %360 = vst.msk [vmem:[%s4 + $0x68] sm:$0xff] %vm44, %v341
  %361 = vst.msk [vmem:[%s4 + $0x70] sm:$0xff] %vm44, %v342
  %362 = vst.msk [vmem:[%s4 + $0x78] sm:$0xff] %vm44, %v343
  %363 = vst.msk [vmem:[%s4 + $0x80] sm:$0xff] %vm44, %v344
  %364 = vst.msk [vmem:[%s4 + $0x88] sm:$0xff] %vm44, %v345
  %365 = vst.msk [vmem:[%s4 + $0x90] sm:$0xff] %vm44, %v346
  // Predicated region
  $region18: #{tpu_custom_call.1} parent=0 // pred_check
    _
  $region19: #{tpu_custom_call.1} parent=0 // pred_check_branch
    %367 = sbr.rel (0) target = $region21
  $region20: #{tpu_custom_call.1} parent=0 // pred_region
    _
  $region21: #{tpu_custom_call.1} parent=0 // pred_fallthru
    _
  // Predicated region
  $region22: #{tpu_custom_call.1} parent=0 // pred_check
    _
  $region23: #{tpu_custom_call.1} parent=0 // pred_check_branch
    %369 = sbr.rel (0) target = $region25
  $region24: #{tpu_custom_call.1} parent=0 // pred_region
    _
  $region25: #{tpu_custom_call.1} parent=0 // pred_fallthru
    _

</llo_original>
